<compile_context>
chip_gen: v6e
topology: v6e:2x2x1
jax: 0.10.0
libtpu: 0.0.40
codegen_flags: <defaults>
</compile_context>

<pallas_src>
import jax
import jax.numpy as jnp
from jax.experimental import pallas as pl
from jax.experimental.pallas import tpu as pltpu


# ----------------------------------------------------------------------------
# VMEM-pipelined tiled copy (placeholder for real per-tile compute).
# ----------------------------------------------------------------------------
def _copy_kernel(x_ref, o_ref):
    # Whole-tile copy; this is where a real forward's elementwise / matmul
    # work would live.
    o_ref[...] = x_ref[...]


def _sublane_multiple(dtype) -> int:
    """Minimum 2nd-to-last-dim multiple for dense tiles on TPU."""
    itemsize = jnp.dtype(dtype).itemsize
    # (8,128) for 4-byte, (16,128) for 2-byte, (32,128) for 1-byte dtypes.
    return max(8, 32 // max(1, itemsize))


def _round_up(x: int, m: int) -> int:
    return (x + m - 1) // m * m


def _vmem_budget():
    """(per-buffer tile byte target, vmem_limit cap) for this TPU generation."""
    target, cap = 6 << 20, 28 << 20            # v7x-safe (64 MiB physical VMEM)
    try:
        vmem_cap = int(pltpu.get_tpu_info().vmem_capacity_bytes)
        if vmem_cap >= (100 << 20):            # v5e / v6e: 128 MiB VMEM
            target, cap = 8 << 20, 48 << 20
    except Exception:
        pass
    return target, cap


def pallas_identity(x: jax.Array,
                    *,
                    target_tile_bytes: int | None = None,
                    min_blocks: int = 4,
                    small_input_bypass_bytes: int = 1 << 20) -> jax.Array:
    """Tiled HBM->VMEM->HBM copy of a 2-D (rows, feats) slab via Pallas.

    Kept as the "compute-ready" path: the structure is exactly what a real
    per-tile forward would use.  For inputs below `small_input_bypass_bytes`
    the pallas_call is skipped entirely (an identity is value-correct and the
    per-step / dispatch overhead would dominate).
    """
    assert x.ndim == 2, "pallas_identity expects a 2-D (rows, feats) slab"
    rows, feats = x.shape
    itemsize = jnp.dtype(x.dtype).itemsize
    total_bytes = rows * feats * itemsize
    if total_bytes == 0 or total_bytes < small_input_bypass_bytes:
        return x

    tgt_default, vmem_cap_limit = _vmem_budget()
    if target_tile_bytes is None:
        target_tile_bytes = tgt_default

    # Lane-dense layout: for a pure copy a reshape is free layout plumbing,
    # and a last dim that's a multiple of 128 turns masked vst.msk into dense
    # vst (the biggest single measured lever on the store side).
    orig_shape = None
    if feats % 128 != 0:
        total = rows * feats
        for lanes in (2048, 1024, 512, 256, 128):
            if total % lanes == 0 and total // lanes >= 1:
                orig_shape = (rows, feats)
                rows, feats = total // lanes, lanes
                x = x.reshape(rows, feats)
                break

    sub = _sublane_multiple(x.dtype)

    # Feature-axis tile: bound per-buffer bytes even for very wide feats so the
    # double-buffered in+out pipeline fits every generation's VMEM (v7x: 64 MiB).
    if feats > 128 and sub * feats * itemsize > target_tile_bytes:
        tile_cols = max(128, (target_tile_bytes // (sub * itemsize)) // 128 * 128)
        tile_cols = min(tile_cols, _round_up(feats, 128))
    else:
        tile_cols = feats

    # Row tile: biggest dtype-aligned count under the byte target, but keep at
    # least `min_blocks` grid steps on big arrays so both v7x TCs get work.
    rows_per_tile = max(sub, (target_tile_bytes // max(1, tile_cols * itemsize)) // sub * sub)
    rows_per_block_cap = max(sub, _round_up(pl.cdiv(rows, min_blocks), sub))
    tile_rows = min(rows_per_tile, rows_per_block_cap, _round_up(rows, sub))

    # Partial last blocks are clipped by Pallas (no jnp.pad / trailing slice):
    # the copy stays at the 1-read + 1-write HBM roofline.
    grid = (pl.cdiv(rows, tile_rows), pl.cdiv(feats, tile_cols))

    # in + out, double-buffered => ~4x tile bytes of VMEM; add headroom and cap
    # at a per-generation-safe scoped limit.
    tile_bytes = tile_rows * tile_cols * itemsize
    vmem_limit = int(max(4 << 20, min(vmem_cap_limit, 4 * tile_bytes + (2 << 20))))

    y = pl.pallas_call(
        _copy_kernel,
        out_shape=jax.ShapeDtypeStruct((rows, feats), x.dtype),
        grid=grid,
        in_specs=[pl.BlockSpec((tile_rows, tile_cols), lambda i, j: (i, j))],
        out_specs=pl.BlockSpec((tile_rows, tile_cols), lambda i, j: (i, j)),
        compiler_params=pltpu.CompilerParams(
            dimension_semantics=("parallel", "parallel"),
            vmem_limit_bytes=vmem_limit,
        ),
    )(x)

    if orig_shape is not None:
        y = y.reshape(orig_shape)
    return y


# ----------------------------------------------------------------------------
# Pure copy fast path: direct HBM->HBM DMA, no VMEM / vreg round trip.
# ----------------------------------------------------------------------------
def pallas_copy_hbm(x: jax.Array, *, max_inflight: int = 4) -> jax.Array:
    """Copy `x` HBM->HBM with a few in-flight async DMAs (near-zero VMEM)."""
    if x.size == 0:
        return x

    lead = x.shape[0] if x.ndim >= 1 else 1
    bounds = sorted(set((lead * c) // max(1, max_inflight)
                        for c in range(max_inflight + 1)))
    if len(bounds) < 2:
        bounds = [0, lead]
    n = len(bounds) - 1
    whole = (x.ndim == 0) or (n == 1)

    def kernel(x_hbm, o_hbm, sems):
        if whole:
            cp = pltpu.make_async_copy(x_hbm, o_hbm, sems.at[0])
            cp.start()
            cp.wait()
        else:
            copies = []
            for c in range(n):
                lo, hi = bounds[c], bounds[c + 1]
                cp = pltpu.make_async_copy(x_hbm.at[lo:hi], o_hbm.at[lo:hi],
                                           sems.at[c])
                cp.start()
                copies.append(cp)
            for cp in copies:
                cp.wait()

    return pl.pallas_call(
        kernel,
        out_shape=jax.ShapeDtypeStruct(x.shape, x.dtype),
        in_specs=[pl.BlockSpec(memory_space=pl.ANY)],
        out_specs=pl.BlockSpec(memory_space=pl.ANY),
        scratch_shapes=[pltpu.SemaphoreType.DMA((max(n, 1),))],
    )(x)


# ----------------------------------------------------------------------------
# Faithful module mirror.
# ----------------------------------------------------------------------------
class VictimPallas:
    """Pallas mirror of the (parameter-free) torch Victim module."""

    def __init__(self) -> None:
        # nn.Module.__init__ only: no parameters to initialize.
        pass

    def forward(self, inputs):
        # torch forward body is `pass` -> returns None.  The hot path launches
        # no kernel at all (any copy would be dead work).
        return None

    def process(self, batch):
        # torch process body is `pass` -> returns None.
        return None


if __name__ == "__main__":
    key = jax.random.PRNGKey(0)

    # Case 1: (B*S, H) f32 slab -> VMEM-pipelined tiled copy (bypass disabled
    # so the kernel actually runs on this small demo input).
    B, S, H = 2, 8, 128
    x = jax.random.normal(key, (B * S, H), dtype=jnp.float32)
    y = pallas_identity(x, small_input_bypass_bytes=0)
    jax.block_until_ready(y)
    assert y.shape == x.shape and y.dtype == x.dtype
    assert bool(jnp.array_equal(y, x))

    # Case 2: bf16 with rows not a multiple of 16 and feats not a multiple of
    # 128 -> exercises the lane-dense reshape + clipped partial block path.
    x2 = jax.random.normal(jax.random.PRNGKey(1), (20, 96)).astype(jnp.bfloat16)
    y2 = pallas_identity(x2, small_input_bypass_bytes=0)
    jax.block_until_ready(y2)
    assert y2.shape == x2.shape and y2.dtype == x2.dtype
    assert bool(jnp.all(y2 == x2))

    # Case 3: pure-copy fast path -> chunked HBM->HBM DMA, no VMEM round trip.
    x3 = jax.random.normal(jax.random.PRNGKey(2), (256, 512), dtype=jnp.float32)
    y3 = pallas_copy_hbm(x3)
    jax.block_until_ready(y3)
    assert y3.shape == x3.shape and y3.dtype == x3.dtype
    assert bool(jnp.array_equal(y3, x3))

    # Default small-input bypass: tiny inputs skip the pallas_call entirely.
    assert pallas_identity(x) is x

    # Faithful module semantics: forward / process return None, no kernel.
    victim = VictimPallas()
    assert victim.forward(x.reshape(B, S, H)) is None
    assert victim.process([x]) is None

    print("KERNEL_OK")
</pallas_src>

<mosaic_0001>
module attributes {stable_mosaic.version = 11 : i64} {
  func.func @_copy_kernel(%arg0: i32, %arg1: i32, %arg2: memref<8x128xf32, #tpu.memory_space<vmem>>, %arg3: memref<8x128xf32, #tpu.memory_space<vmem>>) attributes {dimension_semantics = [#tpu.dimension_semantics<parallel>, #tpu.dimension_semantics<parallel>], iteration_bounds = array<i64: 2, 1>, scalar_prefetch = 0 : i64, scratch_operands = 0 : i64, tpu.core_type = #tpu.core_type<tc>, window_params = [{transform_indices = @transform_0, window_bounds = array<i64: 8, 128>}, {transform_indices = @transform_1, window_bounds = array<i64: 8, 128>}]} {
    %c0 = arith.constant 0 : index
    %c0_0 = arith.constant 0 : index
    %0 = vector.load %arg2[%c0, %c0_0] : memref<8x128xf32, #tpu.memory_space<vmem>>, vector<8x128xf32>
    %c0_1 = arith.constant 0 : index
    %c0_2 = arith.constant 0 : index
    %1 = vector.load %arg3[%c0_1, %c0_2] : memref<8x128xf32, #tpu.memory_space<vmem>>, vector<8x128xf32>
    tpu.vector_store %arg3[%c0_1, %c0_2], %0 {strides = array<i32>} : memref<8x128xf32, #tpu.memory_space<vmem>>, vector<8x128xf32>,
    return
  }
  func.func @transform_0(%arg0: i32, %arg1: i32) -> (i32, i32) {
    %c0_i32 = arith.constant 0 : i32
    return %arg0, %arg1 : i32, i32
  }
  func.func @transform_1(%arg0: i32, %arg1: i32) -> (i32, i32) {
    %c0_i32 = arith.constant 0 : i32
    return %arg0, %arg1 : i32, i32
  }
}

</mosaic_0001>

<llo_original>
// kernel: tpu_custom_call.1
$region0: #{tpu_custom_call.1}
  #allocation0 [shape = 'u32[]', space=smem, size = 0x4, offset = 0x4, fixed_abs, tag = 'smem constant byte address 0x4 - core index']
  #allocation1 [shape = 'u32[144,128]{1,0:T(1,128)}', space=vmem, size = 0x12000, scoped, tag = 'internal scratch']
  %s0 = inlined_call_operand.hbm [shape: f32[16,128], index: 0, kind: input, shape index: {}]
  %s1 = inlined_call_operand.hbm [shape: f32[16,128], index: 1, kind: output, shape index: {}]
  %s2 = sld [smem:[#allocation0]]
  $region41: #{tpu_custom_call.1} parent=0
    _
  %s4 = ssub.s32 1, %s2
  %s5 = scalar_select 0, %s4, %s2
  $region1: #{tpu_custom_call.1} parent=0
    #allocation2 [shape = 'u8[8192]{0}', space=vmem, size = 0x2000, scoped, tag = 'input window, operand 0']
    #allocation3 [shape = 's32[2]{0}', space=sflag, size = 0x8, scoped, tag = 'scoped memory for tpu_custom_call.1']
    #allocation4 [shape = 's32[2]{0}', space=sflag, size = 0x8, scoped, tag = 'scoped memory for tpu_custom_call.1']
    #allocation5 [shape = 'u8[8192]{0}', space=vmem, size = 0x2000, scoped, tag = 'output window, operand 0']
    %6 = vsyncpa [#allocation3], 0
    %s7 = scalar_lea.sflag [#allocation3], 1
    %8 = vsyncpa %s7, 0
    %9 = vsyncpa [#allocation4], 0
    %s10 = scalar_lea.sflag [#allocation4], 1
    %11 = vsyncpa %s10, 0
    loop: start=0, step=1, limit=4
    $region2: #{tpu_custom_call.1} parent=1 // loop_pre_header
      _
    $region3: #{tpu_custom_call.1} parent=1 // loop_header
      %s13 = sphi 0, %s17
      %p14 = scmp.ge.s32.totalorder %s13, 4
      %s20 = sphi 0, %s32
      %s21 = sphi 0, %s28
      %s22 = sphi 0, %s20
      %s23 = sphi 0, %s21
      %s24 = sphi 0, %s22
      %s25 = sphi 0, %s23
      %s37 = sphi 0, %s39
      %s40 = sphi 0, %s37
      %s41 = sphi 0, %s40
      %s57 = sphi 0, %s41
      %s65 = sphi 0, %s67
      %s68 = sphi 0, %s65
      %s69 = sphi 0, %s68
      %s85 = sphi 0, %s69
    $region4: #{tpu_custom_call.1} parent=1 // loop_header_branch
      %16 = sbr.rel (%p14) target = $region8
    $region5: #{tpu_custom_call.1} parent=1 // loop_body
      %s18 = ssub.s32 %s13, 1
      %s19 = ssub.s32 %s13, 2
      %s26 = sadd.s32 1, %s21
      %p27 = scmp.ge.s32.totalorder %s26, 1
      %s28 = scalar_select %p27, 0, %s26
      %s29 = sadd.s32 1, %s20
      %s30 = scalar_select %p27, %s29, %s20
      %p31 = scmp.ge.s32.totalorder %s30, 2
      %s32 = scalar_select %p31, 0, %s30
      %s33 = ssub.s32 %s20, %s32
      %s34 = ssub.s32 %s21, %s28
      %s35 = sor.u32 %s33, %s34
      %p36 = scmp.eq.s32.totalorder %s35, 0
      %s38 = sadd.s32 %s37, 1
      %s39 = scalar_select %p36, %s37, %s38
      %p42 = pneg %p36
      %p43 = scmp.eq.s32.totalorder %s13, 1
      %p44 = por %p42, %p43
      %p45 = scmp.ne.s32.totalorder %s37, %s40
      %p46 = scmp.eq.s32.totalorder %s13, 0
      %p47 = por %p45, %p46
      %p48 = scmp.ne.s32.totalorder %s37, %s40
      %p49 = scmp.eq.s32.totalorder %s18, 1
      %p50 = por %p48, %p49
      %p51 = scmp.ne.s32.totalorder %s40, %s41
      %p52 = scmp.eq.s32.totalorder %s18, 0
      %p53 = por %p51, %p52
      %p54 = scmp.ne.s32.totalorder %s40, %s41
      %p55 = scmp.eq.s32.totalorder %s19, 1
      %p56 = por %p54, %p55
      %p58 = scmp.ne.s32.totalorder %s41, %s57
      %p59 = scmp.eq.s32.totalorder %s19, 0
      %p60 = por %p58, %p59
      %s61 = ssub.s32 %s20, %s32
      %s62 = ssub.s32 %s21, %s28
      %s63 = sor.u32 %s61, %s62
      %p64 = scmp.eq.s32.totalorder %s63, 0
      %s66 = sadd.s32 %s65, 1
      %s67 = scalar_select %p64, %s65, %s66
      %p70 = pneg %p64
      %p71 = scmp.eq.s32.totalorder %s13, 1
      %p72 = por %p70, %p71
      %p73 = scmp.ne.s32.totalorder %s65, %s68
      %p74 = scmp.eq.s32.totalorder %s13, 0
      %p75 = por %p73, %p74
      %p76 = scmp.ne.s32.totalorder %s65, %s68
      %p77 = scmp.eq.s32.totalorder %s18, 1
      %p78 = por %p76, %p77
      %p79 = scmp.ne.s32.totalorder %s68, %s69
      %p80 = scmp.eq.s32.totalorder %s18, 0
      %p81 = por %p79, %p80
      %p82 = scmp.ne.s32.totalorder %s68, %s69
      %p83 = scmp.eq.s32.totalorder %s19, 1
      %p84 = por %p82, %p83
      %p86 = scmp.ne.s32.totalorder %s69, %s85
      %p87 = scmp.eq.s32.totalorder %s19, 0
      %p88 = por %p86, %p87
      %p89 = scmp.le.s32.totalorder 1, %s13
      %p90 = scmp.lt.s32.totalorder %s13, 3
      %p91 = pnand %p89, %p90
      %p92 = pneg %p91
      // Predicated region
      $region9: #{tpu_custom_call.1} parent=5 // pred_check
        _
      $region10: #{tpu_custom_call.1} parent=5 // pred_check_branch
        %94 = sbr.rel (%p91) target = $region12
      $region11: #{tpu_custom_call.1} parent=5 // pred_region
        %s95 = ssub.s32 %s13, 1
      $region12: #{tpu_custom_call.1} parent=5 // pred_fallthru
        _
      %p96 = scmp.lt.s32.totalorder %s13, 2
      // Predicated region
      $region13: #{tpu_custom_call.1} parent=5 // pred_check
        %p97 = pneg %p96
      $region14: #{tpu_custom_call.1} parent=5 // pred_check_branch
        %99 = sbr.rel (%p97) target = $region16
      $region15: #{tpu_custom_call.1} parent=5 // pred_region
        // Predicated region
        $region17: #{tpu_custom_call.1} parent=15 // pred_check
          %p100 = pneg %p47
        $region18: #{tpu_custom_call.1} parent=15 // pred_check_branch
          %102 = sbr.rel (%p100) target = $region20
        $region19: #{tpu_custom_call.1} parent=15 // pred_region
          %s103 = sand.u32 %s37, 1
          %s104 = scalar_lea.sflag [#allocation3], %s103
          %s105 = sand.u32 %s37, 1
          %s106 = smul.addr %s105, 8
          %s107 = scalar_lea.vmem [#allocation2], %s106
          %s109 = ssub.s32 128, 128
          %110 = vsyncadd %s104, %s109
          %s111 = sadd.s32 %s21, %s20
          %s112 = smul.addr %s111, 128
          %s113 = scalar_lea.hbm %s0, %s112
          %s115 = sshll.u32 %s107, 4
          %s116 = int_to_ptr.vmem [resolvable:$true] %s115
          %118 = dma.hbm_to_vmem [thread:$0]  %s113, 128, %s116, %s104
        $region20: #{tpu_custom_call.1} parent=15 // pred_fallthru
          _
      $region16: #{tpu_custom_call.1} parent=5 // pred_fallthru
        _
      %p119 = scmp.le.s32.totalorder 1, %s13
      %p120 = scmp.lt.s32.totalorder %s13, 3
      %p121 = pnand %p119, %p120
      %p122 = pneg %p121
      // Predicated region
      $region21: #{tpu_custom_call.1} parent=5 // pred_check
        _
      $region22: #{tpu_custom_call.1} parent=5 // pred_check_branch
        %124 = sbr.rel (%p121) target = $region24
      $region23: #{tpu_custom_call.1} parent=5 // pred_region
        %s125 = ssub.s32 %s13, 1
        %s126 = sand.u32 %s40, 1
        %s127 = scalar_lea.sflag [#allocation3], %s126
        %s128 = sand.u32 %s40, 1
        %s129 = smul.addr %s128, 8
        %s130 = scalar_lea.vmem [#allocation2], %s129
        // Predicated region
        $region25: #{tpu_custom_call.1} parent=23 // pred_check
          %p131 = pneg %p53
        $region26: #{tpu_custom_call.1} parent=23 // pred_check_branch
          %133 = sbr.rel (%p131) target = $region28
        $region27: #{tpu_custom_call.1} parent=23 // pred_region
          %134 = dma.done %s127, 128
        $region28: #{tpu_custom_call.1} parent=23 // pred_fallthru
          _
        %s135 = sand.u32 %s40, 1
        %s136 = scalar_lea.sflag [#allocation3], %s135
        %s137 = sand.u32 %s40, 1
        %s138 = smul.addr %s137, 8
        %s139 = scalar_lea.vmem [#allocation2], %s138
        %p140 = pneg %p53
        %p141 = pneg %p50
        %p142 = pneg %p81
        %p143 = pneg %p78
        %s144 = sand.u32 %s68, 1
        %s145 = scalar_lea.sflag [#allocation4], %s144
        %s146 = sand.u32 %s68, 1
        %s147 = smul.addr %s146, 8
        %s148 = scalar_lea.vmem [#allocation5], %s147
        %v149 = vld [vmem:[%s130] sm:$0xff]
        %150 = vst [vmem:[%s148] sm:$0xff] %v149
        %s151 = sand.u32 %s68, 1
        %s152 = scalar_lea.sflag [#allocation4], %s151
        %s153 = sand.u32 %s68, 1
        %s154 = smul.addr %s153, 8
        %s155 = scalar_lea.vmem [#allocation5], %s154
        // Predicated region
        $region29: #{tpu_custom_call.1} parent=23 // pred_check
          %p156 = pneg %p78
        $region30: #{tpu_custom_call.1} parent=23 // pred_check_branch
          %158 = sbr.rel (%p156) target = $region32
        $region31: #{tpu_custom_call.1} parent=23 // pred_region
          %s160 = ssub.s32 128, 128
          %161 = vsyncadd %s152, %s160
          %s162 = sadd.s32 %s23, %s22
          %s163 = smul.addr %s162, 128
          %s164 = scalar_lea.hbm %s1, %s163
          %s166 = sshll.u32 %s155, 4
          %s167 = int_to_ptr.vmem [resolvable:$true] %s166
          %169 = dma.vmem_to_hbm [thread:$0]  %s167, 128, %s164, %s152
        $region32: #{tpu_custom_call.1} parent=23 // pred_fallthru
          _
      $region24: #{tpu_custom_call.1} parent=5 // pred_fallthru
        _
      %p170 = scmp.le.s32.totalorder 2, %s13
      // Predicated region
      $region33: #{tpu_custom_call.1} parent=5 // pred_check
        %p171 = pneg %p170
      $region34: #{tpu_custom_call.1} parent=5 // pred_check_branch
        %173 = sbr.rel (%p171) target = $region36
      $region35: #{tpu_custom_call.1} parent=5 // pred_region
        %s174 = ssub.s32 %s13, 2
        // Predicated region
        $region37: #{tpu_custom_call.1} parent=35 // pred_check
          %p175 = pneg %p84
        $region38: #{tpu_custom_call.1} parent=35 // pred_check_branch
          %177 = sbr.rel (%p175) target = $region40
        $region39: #{tpu_custom_call.1} parent=35 // pred_region
          %s178 = sand.u32 %s69, 1
          %s179 = scalar_lea.sflag [#allocation4], %s178
          %s180 = sand.u32 %s69, 1
          %s181 = smul.addr %s180, 8
          %s182 = scalar_lea.vmem [#allocation5], %s181
          %183 = dma.done %s179, 128
        $region40: #{tpu_custom_call.1} parent=35 // pred_fallthru
          _
      $region36: #{tpu_custom_call.1} parent=5 // pred_fallthru
        _
    $region6: #{tpu_custom_call.1} parent=1 // loop_footer
      %s17 = sadd.s32 1, %s13
    $region7: #{tpu_custom_call.1} parent=1 // loop_footer_branch
      %12 = sbr.rel target = $region3
    $region8: #{tpu_custom_call.1} parent=1 // loop_exit
      _
    %184 = vsyncpa [#allocation3], 1
    %s185 = scalar_lea.sflag [#allocation3], 1
    %186 = vsyncpa %s185, 1
    %187 = vsyncpa [#allocation4], 1
    %s188 = scalar_lea.sflag [#allocation4], 1
    %189 = vsyncpa %s188, 1

</llo_original>
